<compile_context>
chip_gen: v7x
topology: tpu7x:2x2x1
jax: 0.10.0
libtpu: 0.0.40
codegen_flags: <defaults>
</compile_context>

<pallas_src>
import jax
import jax.numpy as jnp
from jax.experimental import pallas as pl
from jax.experimental.pallas import tpu as pltpu


def _round_up(x, m):
    return ((x + m - 1) // m) * m


def _make_mlp_kernel(num_layers: int, skip_conn: bool, use_leaky: bool):
    """Build a fused-MLP kernel body for a fixed (static) layer structure."""

    def kernel(x_ref, *refs):
        w_refs = refs[:num_layers]                 # [in_i, out_i], pre-transposed
        b_refs = refs[num_layers:2 * num_layers]   # [1, out_i], f32
        out_ref = refs[2 * num_layers]

        mm_dtype = w_refs[0].dtype  # matmul-input dtype (f32 or bf16)

        def act(v):
            if use_leaky:
                # F.leaky_relu default negative_slope = 0.01
                return jnp.where(v > 0, v, 0.01 * v)
            return jnp.maximum(v, 0.0)

        def linear(v, i):
            # Weights are pre-transposed and pre-cast in the wrapper, so each
            # layer is a plain x @ W on the MXU with f32 accumulation; the only
            # per-layer cast is the (tiny) activation tile on the bf16 path
            # (a no-op on the f32 path).
            return (
                jnp.dot(v.astype(mm_dtype), w_refs[i][...],
                        preferred_element_type=jnp.float32)
                + b_refs[i][...].astype(jnp.float32)
            )

        x = x_ref[...]

        if skip_conn:
            # x = relu(l0(x)); residual blocks of two layers; final linear.
            x = act(linear(x, 0))
            for i in range(1, num_layers - 1, 2):
                x_skip = x
                x = act(linear(act(linear(x, i)), i + 1))
                x = x + x_skip
            x = linear(x, num_layers - 1)
        else:
            for i in range(num_layers):
                x = linear(x, i)
                if i != num_layers - 1:
                    x = act(x)

        out_ref[...] = x.astype(out_ref.dtype)

    return kernel


def mlp_forward(x, weights, biases, *, skip_conn=False, use_leaky=False,
                block_b=4096, compute_dtype=None):
    """Run the fused MLP Pallas kernel.

    x: [B, in_dim] float32
    weights[i]: [out_i, in_i]  (PyTorch nn.Linear layout)
    biases[i]:  [out_i] or [1, out_i]
    compute_dtype: None (f32 matmuls) or jnp.bfloat16 (bf16 MXU inputs with
                   f32 accumulation) for v6e / v7x throughput.
    """
    num_layers = len(weights)
    assert len(biases) == num_layers
    if skip_conn:
        # Net.forward's skip path consumes hidden layers in pairs; only
        # well-defined for an even layer count (same as the reference).
        assert num_layers >= 2 and num_layers % 2 == 0, \
            "skip_conn requires an even num_layers"

    B, in_dim = x.shape
    out_dim = int(weights[-1].shape[0])
    out_dtype = x.dtype

    # ---- one-time wrapper-side layout / dtype prep (outside the hot path) ----
    # Pre-transpose PyTorch [out, in] -> [in, out] and cast to the matmul-input
    # dtype once, so the kernel never re-transposes or re-casts resident params.
    mm_dtype = jnp.dtype(compute_dtype) if compute_dtype is not None else jnp.dtype(x.dtype)
    wts = [jnp.asarray(w).T.astype(mm_dtype) for w in weights]
    bs = [jnp.asarray(b).reshape(1, -1).astype(jnp.float32) for b in biases]
    x_in = x if x.dtype == mm_dtype else x.astype(mm_dtype)

    # ---- batch tiling: no input padding, ragged final block is masked ----
    block_b = max(8, _round_up(int(block_b), 8))
    if B <= block_b:
        tb = B                 # single block spanning the full batch (legal)
    else:
        tb = block_b           # 8-aligned tile; Pallas masks the ragged tail
    # Keep >= 2 grid steps once the batch is sizeable so the "parallel" axis
    # shards across both v7x TensorCores (no effect on single-TC v5e/v6e).
    if B >= 2048 and pl.cdiv(B, tb) < 2:
        tb = _round_up(pl.cdiv(B, 2), 8)
    grid = (pl.cdiv(B, tb),)

    kernel = _make_mlp_kernel(num_layers, skip_conn, use_leaky)

    def const_spec(shape):
        # Same block index every grid step -> parameter stays VMEM-resident
        # and is DMA'd from HBM only once.
        return pl.BlockSpec(shape, lambda i: (0,) * len(shape))

    in_specs = [pl.BlockSpec((tb, in_dim), lambda i: (i, 0))]
    in_specs += [const_spec(tuple(w.shape)) for w in wts]
    in_specs += [const_spec(tuple(b.shape)) for b in bs]
    # Unpadded output block: block last dim == full array dim, so no 16x
    # writeback amplification and no post-kernel slice pass.
    out_specs = pl.BlockSpec((tb, out_dim), lambda i: (i, 0))

    # ---- VMEM budget: resident params + double-buffered x/out tiles ----
    param_bytes = sum(int(w.size) * w.dtype.itemsize for w in wts) \
        + sum(int(b.size) * b.dtype.itemsize for b in bs)
    io_bytes = 2 * 2 * (tb * in_dim * mm_dtype.itemsize
                        + tb * out_dim * jnp.dtype(out_dtype).itemsize)
    need = param_bytes + io_bytes + (8 << 20)
    try:
        vmem_cap = int(pltpu.get_tpu_info().vmem_capacity_bytes)
    except Exception:
        vmem_cap = 64 << 20    # conservative fallback (v7x per-TC VMEM)
    vmem_limit = int(min(max(need, 32 << 20), (vmem_cap * 3) // 4, 100 << 20))

    flops = 2 * B * sum(int(w.shape[0]) * int(w.shape[1]) for w in wts)
    bytes_accessed = (B * in_dim * mm_dtype.itemsize
                      + B * out_dim * jnp.dtype(out_dtype).itemsize
                      + param_bytes)
    cost = pl.CostEstimate(flops=flops, transcendentals=0,
                           bytes_accessed=bytes_accessed)

    out = pl.pallas_call(
        kernel,
        out_shape=jax.ShapeDtypeStruct((B, out_dim), out_dtype),
        grid=grid,
        in_specs=in_specs,
        out_specs=out_specs,
        compiler_params=pltpu.CompilerParams(
            dimension_semantics=("parallel",),
            vmem_limit_bytes=vmem_limit,
        ),
        cost_estimate=cost,
    )(x_in, *wts, *bs)

    return out


def init_params(key, num_layers, in_dim, width, out_dim):
    """Deterministic PyTorch-style init: U(-1/sqrt(fan_in), 1/sqrt(fan_in))."""
    if num_layers == 1:
        dims = [(in_dim, out_dim)]
    else:
        dims = []
        for i in range(num_layers):
            if i == 0:
                dims.append((in_dim, width))
            elif i == num_layers - 1:
                dims.append((width, out_dim))
            else:
                dims.append((width, width))
    weights, biases = [], []
    for (fan_in, fan_out) in dims:
        key, kw, kb = jax.random.split(key, 3)
        bound = 1.0 / (fan_in ** 0.5)
        w = jax.random.uniform(kw, (fan_out, fan_in), jnp.float32, -bound, bound)
        b = jax.random.uniform(kb, (1, fan_out), jnp.float32, -bound, bound)
        weights.append(w)
        biases.append(b)
    return weights, biases


def mlp_reference(x, weights, biases, *, skip_conn=False, use_leaky=False):
    """Plain-JAX reference mirroring Net.forward (affine structure)."""
    num_layers = len(weights)

    def act(v):
        return jnp.where(v > 0, v, 0.01 * v) if use_leaky else jnp.maximum(v, 0.0)

    def linear(v, i):
        return v @ weights[i].T + biases[i]

    if skip_conn:
        x = act(linear(x, 0))
        for i in range(1, num_layers - 1, 2):
            x_skip = x
            x = act(linear(act(linear(x, i)), i + 1))
            x = x + x_skip
        x = linear(x, num_layers - 1)
    else:
        for i in range(num_layers):
            x = linear(x, i)
            if i != num_layers - 1:
                x = act(x)
    return x


if __name__ == "__main__":
    # params['structure'] == 'affine'
    key = jax.random.PRNGKey(0)
    batch, in_dim, width, out_dim = 8, 16, 32, 8

    kx, kp = jax.random.split(key)
    x = jax.random.normal(kx, (batch, in_dim), jnp.float32)

    # Config 1: plain stack (skip_conn = False), 3 layers, f32 matmuls.
    w3, b3 = init_params(kp, 3, in_dim, width, out_dim)
    out_plain = mlp_forward(x, w3, b3, skip_conn=False)
    jax.block_until_ready(out_plain)
    ref_plain = mlp_reference(x, w3, b3, skip_conn=False)
    assert out_plain.shape == (batch, out_dim)
    assert jnp.allclose(out_plain, ref_plain, atol=1e-5, rtol=1e-5)

    # Config 2: residual blocks (skip_conn = True), 4 layers, f32 matmuls.
    w4, b4 = init_params(kp, 4, in_dim, width, out_dim)
    out_skip = mlp_forward(x, w4, b4, skip_conn=True)
    jax.block_until_ready(out_skip)
    ref_skip = mlp_reference(x, w4, b4, skip_conn=True)
    assert out_skip.shape == (batch, out_dim)
    assert jnp.allclose(out_skip, ref_skip, atol=1e-5, rtol=1e-5)

    # Config 3: ragged batch over a multi-step grid (no wrapper-side padding;
    # the final partial block is masked by Pallas) with resident weights.
    xb = jax.random.normal(kx, (300, in_dim), jnp.float32)
    out_big = mlp_forward(xb, w3, b3, skip_conn=False, block_b=128)
    jax.block_until_ready(out_big)
    ref_big = mlp_reference(xb, w3, b3, skip_conn=False)
    assert out_big.shape == (300, out_dim)
    assert jnp.allclose(out_big, ref_big, atol=1e-5, rtol=1e-5)

    # Config 4: bf16 MXU inputs (f32 accumulation) — the v6e/v7x fast path;
    # x and weights are cast once in the wrapper, not per grid step.
    out_bf16 = mlp_forward(x, w3, b3, skip_conn=False, compute_dtype=jnp.bfloat16)
    jax.block_until_ready(out_bf16)
    assert out_bf16.shape == (batch, out_dim)
    assert jnp.allclose(out_bf16, ref_plain, atol=1e-1, rtol=1e-1)

    print("KERNEL_OK")
</pallas_src>

<mosaic_0001>
module attributes {stable_mosaic.version = 11 : i64} {
  func.func @kernel(%arg0: i32, %arg1: memref<8x16xf32, #tpu.memory_space<vmem>>, %arg2: memref<16x32xf32, #tpu.memory_space<vmem>>, %arg3: memref<32x32xf32, #tpu.memory_space<vmem>>, %arg4: memref<32x8xf32, #tpu.memory_space<vmem>>, %arg5: memref<1x32xf32, #tpu.memory_space<vmem>>, %arg6: memref<1x32xf32, #tpu.memory_space<vmem>>, %arg7: memref<1x8xf32, #tpu.memory_space<vmem>>, %arg8: memref<8x8xf32, #tpu.memory_space<vmem>>) attributes {dimension_semantics = [#tpu.dimension_semantics<parallel>], iteration_bounds = array<i64: 1>, scalar_prefetch = 0 : i64, scratch_operands = 0 : i64, tpu.core_type = #tpu.core_type<tc>, window_params = [{transform_indices = @transform_0, window_bounds = array<i64: 8, 16>}, {pipeline_mode = #tpu.pipeline_mode<synchronous>, transform_indices = @transform_1, window_bounds = array<i64: 16, 32>}, {pipeline_mode = #tpu.pipeline_mode<synchronous>, transform_indices = @transform_2, window_bounds = array<i64: 32, 32>}, {pipeline_mode = #tpu.pipeline_mode<synchronous>, transform_indices = @transform_3, window_bounds = array<i64: 32, 8>}, {pipeline_mode = #tpu.pipeline_mode<synchronous>, transform_indices = @transform_4, window_bounds = array<i64: 1, 32>}, {pipeline_mode = #tpu.pipeline_mode<synchronous>, transform_indices = @transform_5, window_bounds = array<i64: 1, 32>}, {pipeline_mode = #tpu.pipeline_mode<synchronous>, transform_indices = @transform_6, window_bounds = array<i64: 1, 8>}, {transform_indices = @transform_7, window_bounds = array<i64: 8, 8>}]} {
    %c0 = arith.constant 0 : index
    %c0_0 = arith.constant 0 : index
    %0 = vector.load %arg1[%c0, %c0_0] : memref<8x16xf32, #tpu.memory_space<vmem>>, vector<8x16xf32>
    %c0_1 = arith.constant 0 : index
    %c0_2 = arith.constant 0 : index
    %1 = vector.load %arg2[%c0_1, %c0_2] : memref<16x32xf32, #tpu.memory_space<vmem>>, vector<16x32xf32>
    %cst = arith.constant dense<0.000000e+00> : vector<8x32xf32>
    %2 = tpu.matmul %0, %1, %cst {dimension_numbers = #tpu.dot_dimension_numbers<[1], [0], [0], [1], [0, 0, 1, 1], [], []>} : vector<8x16xf32>, vector<16x32xf32>, vector<8x32xf32> -> vector<8x32xf32>
    %c0_3 = arith.constant 0 : index
    %c0_4 = arith.constant 0 : index
    %3 = vector.load %arg5[%c0_3, %c0_4] : memref<1x32xf32, #tpu.memory_space<vmem>>, vector<1x32xf32>
    %4 = vector.broadcast %3 : vector<1x32xf32> to vector<8x32xf32>
    %5 = arith.addf %2, %4 : vector<8x32xf32>
    %cst_5 = arith.constant 0.000000e+00 : f32
    %6 = vector.broadcast %cst_5 : f32 to vector<8x32xf32>
    %7 = arith.maximumf %5, %6 : vector<8x32xf32>
    %c0_6 = arith.constant 0 : index
    %c0_7 = arith.constant 0 : index
    %8 = vector.load %arg3[%c0_6, %c0_7] : memref<32x32xf32, #tpu.memory_space<vmem>>, vector<32x32xf32>
    %cst_8 = arith.constant dense<0.000000e+00> : vector<8x32xf32>
    %9 = tpu.matmul %7, %8, %cst_8 {dimension_numbers = #tpu.dot_dimension_numbers<[1], [0], [0], [1], [0, 0, 1, 1], [], []>} : vector<8x32xf32>, vector<32x32xf32>, vector<8x32xf32> -> vector<8x32xf32>
    %c0_9 = arith.constant 0 : index
    %c0_10 = arith.constant 0 : index
    %10 = vector.load %arg6[%c0_9, %c0_10] : memref<1x32xf32, #tpu.memory_space<vmem>>, vector<1x32xf32>
    %11 = vector.broadcast %10 : vector<1x32xf32> to vector<8x32xf32>
    %12 = arith.addf %9, %11 : vector<8x32xf32>
    %cst_11 = arith.constant 0.000000e+00 : f32
    %13 = vector.broadcast %cst_11 : f32 to vector<8x32xf32>
    %14 = arith.maximumf %12, %13 : vector<8x32xf32>
    %c0_12 = arith.constant 0 : index
    %c0_13 = arith.constant 0 : index
    %15 = vector.load %arg4[%c0_12, %c0_13] : memref<32x8xf32, #tpu.memory_space<vmem>>, vector<32x8xf32>
    %cst_14 = arith.constant dense<0.000000e+00> : vector<8x8xf32>
    %16 = tpu.matmul %14, %15, %cst_14 {dimension_numbers = #tpu.dot_dimension_numbers<[1], [0], [0], [1], [0, 0, 1, 1], [], []>} : vector<8x32xf32>, vector<32x8xf32>, vector<8x8xf32> -> vector<8x8xf32>
    %c0_15 = arith.constant 0 : index
    %c0_16 = arith.constant 0 : index
    %17 = vector.load %arg7[%c0_15, %c0_16] : memref<1x8xf32, #tpu.memory_space<vmem>>, vector<1x8xf32>
    %18 = vector.broadcast %17 : vector<1x8xf32> to vector<8x8xf32>
    %19 = arith.addf %16, %18 : vector<8x8xf32>
    %c0_17 = arith.constant 0 : index
    %c0_18 = arith.constant 0 : index
    %20 = vector.load %arg8[%c0_17, %c0_18] : memref<8x8xf32, #tpu.memory_space<vmem>>, vector<8x8xf32>
    tpu.vector_store %arg8[%c0_17, %c0_18], %19 {strides = array<i32>} : memref<8x8xf32, #tpu.memory_space<vmem>>, vector<8x8xf32>,
    return
  }
  func.func @transform_0(%arg0: i32) -> (i32, i32) {
    %c0_i32 = arith.constant 0 : i32
    %c0_i32_0 = arith.constant 0 : i32
    return %arg0, %c0_i32 : i32, i32
  }
  func.func @transform_1(%arg0: i32) -> (i32, i32) {
    %c0_i32 = arith.constant 0 : i32
    %c0_i32_0 = arith.constant 0 : i32
    %c0_i32_1 = arith.constant 0 : i32
    return %c0_i32, %c0_i32_0 : i32, i32
  }
  func.func @transform_2(%arg0: i32) -> (i32, i32) {
    %c0_i32 = arith.constant 0 : i32
    %c0_i32_0 = arith.constant 0 : i32
    %c0_i32_1 = arith.constant 0 : i32
    return %c0_i32, %c0_i32_0 : i32, i32
  }
  func.func @transform_3(%arg0: i32) -> (i32, i32) {
    %c0_i32 = arith.constant 0 : i32
    %c0_i32_0 = arith.constant 0 : i32
    %c0_i32_1 = arith.constant 0 : i32
    return %c0_i32, %c0_i32_0 : i32, i32
  }
  func.func @transform_4(%arg0: i32) -> (i32, i32) {
    %c0_i32 = arith.constant 0 : i32
    %c0_i32_0 = arith.constant 0 : i32
    %c0_i32_1 = arith.constant 0 : i32
    return %c0_i32, %c0_i32_0 : i32, i32
  }
  func.func @transform_5(%arg0: i32) -> (i32, i32) {
    %c0_i32 = arith.constant 0 : i32
    %c0_i32_0 = arith.constant 0 : i32
    %c0_i32_1 = arith.constant 0 : i32
    return %c0_i32, %c0_i32_0 : i32, i32
  }
  func.func @transform_6(%arg0: i32) -> (i32, i32) {
    %c0_i32 = arith.constant 0 : i32
    %c0_i32_0 = arith.constant 0 : i32
    %c0_i32_1 = arith.constant 0 : i32
    return %c0_i32, %c0_i32_0 : i32, i32
  }
  func.func @transform_7(%arg0: i32) -> (i32, i32) {
    %c0_i32 = arith.constant 0 : i32
    %c0_i32_0 = arith.constant 0 : i32
    return %arg0, %c0_i32 : i32, i32
  }
}

</mosaic_0001>

<llo_original>
// kernel: tpu_custom_call.1
$region0: #{tpu_custom_call.1}
  #allocation0 [shape = 'u32[]', space=smem, size = 0x4, offset = 0x4, fixed_abs, tag = 'smem constant byte address 0x4 - core index']
  #allocation1 [shape = 'u32[144,128]{1,0:T(1,128)}', space=vmem, size = 0x12000, scoped, tag = 'internal scratch']
  %s0 = inlined_call_operand.vmem [shape: f32[8,16], index: 0, kind: input, shape index: {}]
  %s1 = inlined_call_operand.hbm [shape: f32[16,32], index: 1, kind: input, shape index: {}]
  %s2 = inlined_call_operand.vmem [shape: f32[32,32], index: 2, kind: input, shape index: {}]
  %s3 = inlined_call_operand.vmem [shape: f32[32,8], index: 3, kind: input, shape index: {}]
  %s4 = inlined_call_operand.vmem [shape: f32[1,32], index: 4, kind: input, shape index: {}]
  %s5 = inlined_call_operand.vmem [shape: f32[1,32], index: 5, kind: input, shape index: {}]
  %s6 = inlined_call_operand.vmem [shape: f32[1,8], index: 6, kind: input, shape index: {}]
  %s7 = inlined_call_operand.hbm [shape: f32[8,8], index: 7, kind: output, shape index: {}]
  %s8 = sld [smem:[#allocation0]]
  $region42: #{tpu_custom_call.1} parent=0
    _
  %s10 = ssub.s32 1, %s8
  %s11 = scalar_select 0, %s10, %s8
  $region1: #{tpu_custom_call.1} parent=0
    #allocation2 [shape = 'u8[8192]{0}', space=vmem, size = 0x2000, scoped, tag = 'input window, operand 1, single buffered']
    #allocation3 [shape = 's32[1]{0}', space=sflag, size = 0x4, scoped, tag = 'scoped memory for tpu_custom_call.1']
    #allocation4 [shape = 's32[1]{0}', space=sflag, size = 0x4, scoped, tag = 'scoped memory for tpu_custom_call.1']
    #allocation5 [shape = 'u8[4096]{0}', space=vmem, size = 0x1000, scoped, tag = 'output window, operand 0, single buffered']
    %12 = vsyncpa [#allocation3], 0
    %13 = vsyncpa [#allocation4], 0
    // Predicated region
    $region2: #{tpu_custom_call.1} parent=1 // pred_check
      _
    $region3: #{tpu_custom_call.1} parent=1 // pred_check_branch
      %15 = sbr.rel (0) target = $region5
    $region4: #{tpu_custom_call.1} parent=1 // pred_region
      _
    $region5: #{tpu_custom_call.1} parent=1 // pred_fallthru
      _
    // Predicated region
    $region6: #{tpu_custom_call.1} parent=1 // pred_check
      _
    $region7: #{tpu_custom_call.1} parent=1 // pred_check_branch
      %17 = sbr.rel (0) target = $region9
    $region8: #{tpu_custom_call.1} parent=1 // pred_region
      %s19 = ssub.s32 256, 256
      %20 = vsyncadd [#allocation3], %s19
      %s21 = sshll.u32 [#allocation2], 4
      %s22 = int_to_ptr.vmem [resolvable:$true] %s21
      %27 = dma.hbm_to_vmem [thread:$0]  %s1, 256, %s22, [#allocation3], 128, 128, 8
    $region9: #{tpu_custom_call.1} parent=1 // pred_fallthru
      _
    // Predicated region
    $region10: #{tpu_custom_call.1} parent=1 // pred_check
      _
    $region11: #{tpu_custom_call.1} parent=1 // pred_check_branch
      %29 = sbr.rel (0) target = $region13
    $region12: #{tpu_custom_call.1} parent=1 // pred_region
      _
    $region13: #{tpu_custom_call.1} parent=1 // pred_fallthru
      _
    // Predicated region
    $region14: #{tpu_custom_call.1} parent=1 // pred_check
      _
    $region15: #{tpu_custom_call.1} parent=1 // pred_check_branch
      %31 = sbr.rel (0) target = $region17
    $region16: #{tpu_custom_call.1} parent=1 // pred_region
      _
    $region17: #{tpu_custom_call.1} parent=1 // pred_fallthru
      _
    // Predicated region
    $region18: #{tpu_custom_call.1} parent=1 // pred_check
      _
    $region19: #{tpu_custom_call.1} parent=1 // pred_check_branch
      %33 = sbr.rel (0) target = $region21
    $region20: #{tpu_custom_call.1} parent=1 // pred_region
      _
    $region21: #{tpu_custom_call.1} parent=1 // pred_fallthru
      _
    // Predicated region
    $region22: #{tpu_custom_call.1} parent=1 // pred_check
      _
    $region23: #{tpu_custom_call.1} parent=1 // pred_check_branch
      %35 = sbr.rel (0) target = $region25
    $region24: #{tpu_custom_call.1} parent=1 // pred_region
      _
    $region25: #{tpu_custom_call.1} parent=1 // pred_fallthru
      _
    // Predicated region
    $region26: #{tpu_custom_call.1} parent=1 // pred_check
      _
    $region27: #{tpu_custom_call.1} parent=1 // pred_check_branch
      %37 = sbr.rel (0) target = $region29
    $region28: #{tpu_custom_call.1} parent=1 // pred_region
      _
    $region29: #{tpu_custom_call.1} parent=1 // pred_fallthru
      _
    // Predicated region
    $region30: #{tpu_custom_call.1} parent=1 // pred_check
      _
    $region31: #{tpu_custom_call.1} parent=1 // pred_check_branch
      %39 = sbr.rel (0) target = $region33
    $region32: #{tpu_custom_call.1} parent=1 // pred_region
      %40 = dma.done [#allocation3], 256
    $region33: #{tpu_custom_call.1} parent=1 // pred_fallthru
      _
    %v41 = vld [vmem:[%s0] sm:$0xff]
    %v42 = vld [vmem:[#allocation2] sm:$0xff]
    %v43 = vld [vmem:[#allocation2 + $0x8] sm:$0xff]
    %v44 = vld [vmem:[%s4] sm:$0x1]
    %v46 = vlaneseq
    %v47 = vshrl.u32 %v46, 7
    %v48 = vsub.s32 0, %v47
    %v49 = vrot.slane %v44, %v48
    %vm51 = vcmask 130048
    %v53 = vsel %vm51, %v41, 0
    %55 = vmatprep.subr.mxu0 0.0
    %56 = vmatpush1.msra.mxu0 %v42
    %57 = vmatprep.subr.mxu0 0.0
    %58 = vmatpush1.msra.mxu0 %v43
    %59 = vmatprep.subr.mxu0 0.0
    %60 = vmatpush1.msra.mxu0 0.0
    %61 = vmatprep.subr.mxu0 0.0
    %62 = vmatpush1.msra.mxu0 0.0
    %63 = vmatprep.subr.mxu0 0.0
    %64 = vmatpush1.msra.mxu0 0.0
    %65 = vmatprep.subr.mxu0 0.0
    %66 = vmatpush1.msra.mxu0 0.0
    %67 = vmatprep.subr.mxu0 0.0
    %68 = vmatpush1.msra.mxu0 0.0
    %69 = vmatprep.subr.mxu0 0.0
    %70 = vmatpush1.msra.mxu0 0.0
    %71 = vmatprep.subr.mxu0 0.0
    %72 = vmatpush1.msra.mxu0 0.0
    %73 = vmatprep.subr.mxu0 0.0
    %74 = vmatpush1.msra.mxu0 0.0
    %75 = vmatprep.subr.mxu0 0.0
    %76 = vmatpush1.msra.mxu0 0.0
    %77 = vmatprep.subr.mxu0 0.0
    %78 = vmatpush1.msra.mxu0 0.0
    %79 = vmatprep.subr.mxu0 0.0
    %80 = vmatpush1.msra.mxu0 0.0
    %81 = vmatprep.subr.mxu0 0.0
    %82 = vmatpush1.msra.mxu0 0.0
    %83 = vmatprep.subr.mxu0 0.0
    %84 = vmatpush1.msra.mxu0 0.0
    %85 = vmatprep.subr.mxu0 0.0
    %86 = vmatpush1.msra.mxu0 0.0
    %87 = vmatprep.subr.mxu0 0.0
    %88 = vmatpush1.msra.mxu0 0.0
    %89 = vmatprep.subr.mxu0 0.0
    %90 = vmatpush1.msra.mxu0 0.0
    %91 = vmatprep.subr.mxu0 0.0
    %92 = vmatpush1.msra.mxu0 0.0
    %93 = vmatprep.subr.mxu0 0.0
    %94 = vmatpush1.msra.mxu0 0.0
    %95 = vmatprep.subr.mxu0 0.0
    %96 = vmatpush1.msra.mxu0 0.0
    %97 = vmatprep.subr.mxu0 0.0
    %98 = vmatpush1.msra.mxu0 0.0
    %99 = vmatprep.subr.mxu0 0.0
    %100 = vmatpush1.msra.mxu0 0.0
    %101 = vmatprep.subr.mxu0 0.0
    %102 = vmatpush1.msra.mxu0 0.0
    %103 = vmatprep.subr.mxu0 0.0
    %104 = vmatpush1.msra.mxu0 0.0
    %105 = vmatprep.subr.mxu0 0.0
    %106 = vmatpush1.msra.mxu0 0.0
    %107 = vmatprep.subr.mxu0 0.0
    %108 = vmatpush1.msra.mxu0 0.0
    %109 = vmatprep.subr.mxu0 0.0
    %110 = vmatpush1.msra.mxu0 0.0
    %111 = vmatprep.subr.mxu0 0.0
    %112 = vmatpush1.msra.mxu0 0.0
    %113 = vmatprep.subr.mxu0 0.0
    %114 = vmatpush1.msra.mxu0 0.0
    %115 = vmatprep.subr.mxu0 0.0
    %116 = vmatpush1.msra.mxu0 0.0
    %117 = vmatprep.subr.mxu0 0.0
    %118 = vmatpush1.msra.mxu0 0.0
    %119 = vmatprep.mubr.f32.mxu0 0.0
    %120 = vmatmul.mubr.f32.gmra.mrb[0].mxu0 %v53
    %v121 = vpop.f32.mrb[0].mxu0
    %v122 = vadd.f32 %v49, %v121
    %v123 = vpop.f32.mrb[0].mxu0
    %124 = vdwg.mxu0
    %v125 = vmax.f32 %v122, 0.0
    %v126 = vld [vmem:[%s2] sm:$0xff]
    %v127 = vld [vmem:[%s2 + $0x8] sm:$0xff]
    %v128 = vld [vmem:[%s2 + $0x10] sm:$0xff]
    %v129 = vld [vmem:[%s2 + $0x18] sm:$0xff]
    %v130 = vld [vmem:[%s5] sm:$0x1]
    %v132 = vlaneseq
    %v133 = vshrl.u32 %v132, 7
    %v134 = vsub.s32 0, %v133
    %v135 = vrot.slane %v130, %v134
    %vm137 = vcmask 261120
    %v139 = vsel %vm137, %v125, 0
    %141 = vmatprep.subr.mxu0 0.0
    %142 = vmatpush1.msra.mxu0 %v126
    %143 = vmatprep.subr.mxu0 0.0
    %144 = vmatpush1.msra.mxu0 %v127
    %145 = vmatprep.subr.mxu0 0.0
    %146 = vmatpush1.msra.mxu0 %v128
    %147 = vmatprep.subr.mxu0 0.0
    %148 = vmatpush1.msra.mxu0 %v129
    %149 = vmatprep.subr.mxu0 0.0
    %150 = vmatpush1.msra.mxu0 0.0
    %151 = vmatprep.subr.mxu0 0.0
    %152 = vmatpush1.msra.mxu0 0.0
    %153 = vmatprep.subr.mxu0 0.0
    %154 = vmatpush1.msra.mxu0 0.0
    %155 = vmatprep.subr.mxu0 0.0
    %156 = vmatpush1.msra.mxu0 0.0
    %157 = vmatprep.subr.mxu0 0.0
    %158 = vmatpush1.msra.mxu0 0.0
    %159 = vmatprep.subr.mxu0 0.0
    %160 = vmatpush1.msra.mxu0 0.0
    %161 = vmatprep.subr.mxu0 0.0
    %162 = vmatpush1.msra.mxu0 0.0
    %163 = vmatprep.subr.mxu0 0.0
    %164 = vmatpush1.msra.mxu0 0.0
    %165 = vmatprep.subr.mxu0 0.0
    %166 = vmatpush1.msra.mxu0 0.0
    %167 = vmatprep.subr.mxu0 0.0
    %168 = vmatpush1.msra.mxu0 0.0
    %169 = vmatprep.subr.mxu0 0.0
    %170 = vmatpush1.msra.mxu0 0.0
    %171 = vmatprep.subr.mxu0 0.0
    %172 = vmatpush1.msra.mxu0 0.0
    %173 = vmatprep.subr.mxu0 0.0
    %174 = vmatpush1.msra.mxu0 0.0
    %175 = vmatprep.subr.mxu0 0.0
    %176 = vmatpush1.msra.mxu0 0.0
    %177 = vmatprep.subr.mxu0 0.0
    %178 = vmatpush1.msra.mxu0 0.0
    %179 = vmatprep.subr.mxu0 0.0
    %180 = vmatpush1.msra.mxu0 0.0
    %181 = vmatprep.subr.mxu0 0.0
    %182 = vmatpush1.msra.mxu0 0.0
    %183 = vmatprep.subr.mxu0 0.0
    %184 = vmatpush1.msra.mxu0 0.0
    %185 = vmatprep.subr.mxu0 0.0
    %186 = vmatpush1.msra.mxu0 0.0
    %187 = vmatprep.subr.mxu0 0.0
    %188 = vmatpush1.msra.mxu0 0.0
    %189 = vmatprep.subr.mxu0 0.0
    %190 = vmatpush1.msra.mxu0 0.0
    %191 = vmatprep.subr.mxu0 0.0
    %192 = vmatpush1.msra.mxu0 0.0
    %193 = vmatprep.subr.mxu0 0.0
    %194 = vmatpush1.msra.mxu0 0.0
    %195 = vmatprep.subr.mxu0 0.0
    %196 = vmatpush1.msra.mxu0 0.0
    %197 = vmatprep.subr.mxu0 0.0
    %198 = vmatpush1.msra.mxu0 0.0
    %199 = vmatprep.subr.mxu0 0.0
    %200 = vmatpush1.msra.mxu0 0.0
    %201 = vmatprep.subr.mxu0 0.0
    %202 = vmatpush1.msra.mxu0 0.0
    %203 = vmatprep.subr.mxu0 0.0
    %204 = vmatpush1.msra.mxu0 0.0
    %205 = vmatprep.mubr.f32.mxu0 0.0
    %206 = vmatmul.mubr.f32.gmra.mrb[0].mxu0 %v139
    %v207 = vpop.f32.mrb[0].mxu0
    %v208 = vadd.f32 %v135, %v207
    %v209 = vpop.f32.mrb[0].mxu0
    %210 = vdwg.mxu0
    %v211 = vmax.f32 %v208, 0.0
    %v212 = vld [vmem:[%s3] sm:$0xff]
    %v213 = vld [vmem:[%s3 + $0x8] sm:$0xff]
    %v214 = vld [vmem:[%s3 + $0x10] sm:$0xff]
    %v215 = vld [vmem:[%s3 + $0x18] sm:$0xff]
    %v216 = vld [vmem:[%s6] sm:$0x1]
    %v218 = vlaneseq
    %v219 = vshrl.u32 %v218, 7
    %v220 = vsub.s32 0, %v219
    %v221 = vrot.slane %v216, %v220
    %v224 = vsel %vm137, %v211, 0
    %226 = vmatprep.subr.mxu0 0.0
    %227 = vmatpush1.msra.mxu0 %v212
    %228 = vmatprep.subr.mxu0 0.0
    %229 = vmatpush1.msra.mxu0 %v213
    %230 = vmatprep.subr.mxu0 0.0
    %231 = vmatpush1.msra.mxu0 %v214
    %232 = vmatprep.subr.mxu0 0.0
    %233 = vmatpush1.msra.mxu0 %v215
    %234 = vmatprep.subr.mxu0 0.0
    %235 = vmatpush1.msra.mxu0 0.0
    %236 = vmatprep.subr.mxu0 0.0
    %237 = vmatpush1.msra.mxu0 0.0
    %238 = vmatprep.subr.mxu0 0.0
    %239 = vmatpush1.msra.mxu0 0.0
    %240 = vmatprep.subr.mxu0 0.0
    %241 = vmatpush1.msra.mxu0 0.0
    %242 = vmatprep.subr.mxu0 0.0
    %243 = vmatpush1.msra.mxu0 0.0
    %244 = vmatprep.subr.mxu0 0.0
    %245 = vmatpush1.msra.mxu0 0.0
    %246 = vmatprep.subr.mxu0 0.0
    %247 = vmatpush1.msra.mxu0 0.0
    %248 = vmatprep.subr.mxu0 0.0
    %249 = vmatpush1.msra.mxu0 0.0
    %250 = vmatprep.subr.mxu0 0.0
    %251 = vmatpush1.msra.mxu0 0.0
    %252 = vmatprep.subr.mxu0 0.0
    %253 = vmatpush1.msra.mxu0 0.0
    %254 = vmatprep.subr.mxu0 0.0
    %255 = vmatpush1.msra.mxu0 0.0
    %256 = vmatprep.subr.mxu0 0.0
    %257 = vmatpush1.msra.mxu0 0.0
    %258 = vmatprep.subr.mxu0 0.0
    %259 = vmatpush1.msra.mxu0 0.0
    %260 = vmatprep.subr.mxu0 0.0
    %261 = vmatpush1.msra.mxu0 0.0
    %262 = vmatprep.subr.mxu0 0.0
    %263 = vmatpush1.msra.mxu0 0.0
    %264 = vmatprep.subr.mxu0 0.0
    %265 = vmatpush1.msra.mxu0 0.0
    %266 = vmatprep.subr.mxu0 0.0
    %267 = vmatpush1.msra.mxu0 0.0
    %268 = vmatprep.subr.mxu0 0.0
    %269 = vmatpush1.msra.mxu0 0.0
    %270 = vmatprep.subr.mxu0 0.0
    %271 = vmatpush1.msra.mxu0 0.0
    %272 = vmatprep.subr.mxu0 0.0
    %273 = vmatpush1.msra.mxu0 0.0
    %274 = vmatprep.subr.mxu0 0.0
    %275 = vmatpush1.msra.mxu0 0.0
    %276 = vmatprep.subr.mxu0 0.0
    %277 = vmatpush1.msra.mxu0 0.0
    %278 = vmatprep.subr.mxu0 0.0
    %279 = vmatpush1.msra.mxu0 0.0
    %280 = vmatprep.subr.mxu0 0.0
    %281 = vmatpush1.msra.mxu0 0.0
    %282 = vmatprep.subr.mxu0 0.0
    %283 = vmatpush1.msra.mxu0 0.0
    %284 = vmatprep.subr.mxu0 0.0
    %285 = vmatpush1.msra.mxu0 0.0
    %286 = vmatprep.subr.mxu0 0.0
    %287 = vmatpush1.msra.mxu0 0.0
    %288 = vmatprep.subr.mxu0 0.0
    %289 = vmatpush1.msra.mxu0 0.0
    %290 = vmatprep.mubr.f32.mxu0 0.0
    %291 = vmatmul.mubr.f32.gmra.mrb[0].mxu0 %v224
    %v292 = vpop.f32.mrb[0].mxu0
    %v293 = vadd.f32 %v221, %v292
    %v294 = vpop.f32.mrb[0].mxu0
    %295 = vdwg.mxu0
    %vm296 = vcmask 64512
    %297 = vst.msk [vmem:[#allocation5] sm:$0xff] %vm296, %v293
    // Predicated region
    $region34: #{tpu_custom_call.1} parent=1 // pred_check
      _
    $region35: #{tpu_custom_call.1} parent=1 // pred_check_branch
      %299 = sbr.rel (0) target = $region37
    $region36: #{tpu_custom_call.1} parent=1 // pred_region
      %s301 = ssub.s32 128, 128
      %302 = vsyncadd [#allocation4], %s301
      %s304 = sshll.u32 [#allocation5], 4
      %s305 = int_to_ptr.vmem [resolvable:$true] %s304
      %307 = dma.vmem_to_hbm [thread:$0]  %s305, 128, %s7, [#allocation4]
    $region37: #{tpu_custom_call.1} parent=1 // pred_fallthru
      _
    // Predicated region
    $region38: #{tpu_custom_call.1} parent=1 // pred_check
      _
    $region39: #{tpu_custom_call.1} parent=1 // pred_check_branch
      %309 = sbr.rel (0) target = $region41
    $region40: #{tpu_custom_call.1} parent=1 // pred_region
      %310 = dma.done [#allocation4], 128
    $region41: #{tpu_custom_call.1} parent=1 // pred_fallthru
      _
    %311 = vsyncpa [#allocation3], 1
    %312 = vsyncpa [#allocation4], 1

</llo_original>
